<compile_context>
chip_gen: v7x
topology: tpu7x:2x2x1
jax: 0.10.0
libtpu: 0.0.40
codegen_flags: <defaults>
</compile_context>

<pallas_src>
import functools

import jax
import jax.numpy as jnp
from jax.experimental import pallas as pl
from jax.experimental.pallas import tpu as pltpu

HIDDEN = 64
SIDE = 8
NUM_INPUTS = SIDE * SIDE          # env.level_area = side_length**2 = 64
NUM_OUTPUTS = 4
LOG_STD_INIT = 0.0                # std=0.0 in module ctor -> log_std = 0

OUT_LANES = 8                     # merged output slab: [mu(4) | value(1) | pad(3)]
MAX_BLOCK_ROWS = 8192             # large tile to amortize per-grid-step overhead
MIN_GRID_STEPS = 4                # keep >=4 steps for large B (v7x has 2 TCs)


def _round_up(n, m):
    return (n + m - 1) // m * m


def _pick_tile(batch, max_block_rows):
    """Batch tile: big enough to amortize ~0.35us/step, small enough to keep
    >=MIN_GRID_STEPS grid steps for large batches (megacore on v7x)."""
    tb = _round_up(max(1, (batch + MIN_GRID_STEPS - 1) // MIN_GRID_STEPS), 8)
    tb = min(tb, max_block_rows, _round_up(batch, 8))
    return max(tb, 8)


def actor_critic_kernel(x_ref, w1_ref, b1_ref, w2_ref, b2_ref, out_ref, *,
                        num_actions):
    # ---- fused first layer: [TB, D] @ [D, 2H]  (cols 0:H critic, H:2H actor)
    x = x_ref[...].astype(jnp.bfloat16)          # f32 streamed, cast on the VPU
    h = jnp.dot(x, w1_ref[...], preferred_element_type=jnp.float32)
    h = jnp.maximum(h + b1_ref[...], 0.0)                             # [TB, 2H] f32

    # ---- fused heads: block-diagonal [2H, OUT_LANES] weight
    #   lanes [0, A)   = actor logits  (from rows H:2H)
    #   lane  A        = critic value  (from rows 0:H)
    #   lanes (A, 8)   = zero padding
    h2 = jnp.dot(h.astype(jnp.bfloat16), w2_ref[...],
                 preferred_element_type=jnp.float32) + b2_ref[...]    # [TB, 8] f32

    # ---- softmax over the logit lanes only (exact divide for sum(mu)==1)
    lane = jax.lax.broadcasted_iota(jnp.int32, h2.shape, 1)
    masked = jnp.where(lane < num_actions, h2, -1e30)
    m = jnp.max(masked, axis=-1, keepdims=True)
    e = jnp.exp(masked - m)                        # padded lanes underflow to 0
    mu_full = e / jnp.sum(e, axis=-1, keepdims=True)

    # ---- merged output: [mu(A) | value(1) | ~zero pad]
    out_ref[...] = jnp.where(lane == num_actions, h2, mu_full)


def fuse_params(params):
    """Build the fused/casted kernel operands ONCE per parameter update.
    (Hoisted out of the per-forward hot path per perf review.)"""
    H = params["w1c"].shape[1]
    A = params["w2a"].shape[1]
    assert A + 1 <= OUT_LANES

    w1 = jnp.concatenate([params["w1c"], params["w1a"]], axis=1)      # [D, 2H]
    b1 = jnp.concatenate([params["b1c"], params["b1a"]], axis=1)      # [1, 2H]
    w2 = jnp.zeros((2 * H, OUT_LANES), jnp.float32)
    w2 = w2.at[H:, :A].set(params["w2a"])          # actor logits -> lanes [0, A)
    w2 = w2.at[:H, A:A + 1].set(params["w2c"])     # critic value -> lane A
    b2 = jnp.zeros((1, OUT_LANES), jnp.float32)
    b2 = b2.at[:, :A].set(params["b2a"])
    b2 = b2.at[:, A:A + 1].set(params["b2c"])

    return {
        "w1": w1.astype(jnp.bfloat16),
        "b1": b1.astype(jnp.float32),
        "w2": w2.astype(jnp.bfloat16),
        "b2": b2.astype(jnp.float32),
        "log_std": params["log_std"],
        "hidden": H,
        "num_actions": A,
    }


def actor_critic_forward(x, fused, *, max_block_rows=MAX_BLOCK_ROWS):
    """x: [B, NUM_INPUTS] float32. `fused` comes from fuse_params().
    Returns (mu, std, value)."""
    B, D = x.shape
    H = fused["hidden"]
    A = fused["num_actions"]

    tb = _pick_tile(B, max_block_rows)
    grid = (pl.cdiv(B, tb),)          # no padding; Pallas masks the last block

    def _run(single_buffer_weights):
        wkw = ({"pipeline_mode": pl.Buffered(1)} if single_buffer_weights else {})
        in_specs = [
            pl.BlockSpec((tb, D), lambda i: (i, 0)),                     # x streamed f32
            pl.BlockSpec((D, 2 * H), lambda i: (0, 0), **wkw),           # w1 resident
            pl.BlockSpec((1, 2 * H), lambda i: (0, 0), **wkw),           # b1 resident
            pl.BlockSpec((2 * H, OUT_LANES), lambda i: (0, 0), **wkw),   # w2 resident
            pl.BlockSpec((1, OUT_LANES), lambda i: (0, 0), **wkw),       # b2 resident
        ]
        return pl.pallas_call(
            functools.partial(actor_critic_kernel, num_actions=A),
            out_shape=jax.ShapeDtypeStruct((B, OUT_LANES), jnp.float32),
            grid=grid,
            in_specs=in_specs,
            out_specs=pl.BlockSpec((tb, OUT_LANES), lambda i: (i, 0)),
            compiler_params=pltpu.CompilerParams(
                dimension_semantics=("parallel",),
                vmem_limit_bytes=32 * 1024 * 1024,
            ),
        )(x, fused["w1"], fused["b1"], fused["w2"], fused["b2"])

    try:
        out = _run(True)        # single-buffered resident weights (frees VMEM)
    except Exception:
        out = _run(False)       # fallback if pipeline_mode/Buffered(1) unsupported

    mu = out[:, :A]
    value = out[:, A:A + 1]
    # std depends only on parameters -> computed outside the kernel.
    std = jnp.broadcast_to(jnp.exp(fused["log_std"]), mu.shape)
    return mu, std, value


def init_params(key):
    """Matches init_weights: Linear weights ~ N(0, 0.1), biases = 0.1.
    log_std = ones(1, num_outputs) * 0.0"""
    ks = jax.random.split(key, 4)
    n = lambda k, shape: (0.1 * jax.random.normal(k, shape)).astype(jnp.float32)
    return {
        # critic
        "w1c": n(ks[0], (NUM_INPUTS, HIDDEN)),
        "b1c": jnp.full((1, HIDDEN), 0.1, jnp.float32),
        "w2c": n(ks[1], (HIDDEN, 1)),
        "b2c": jnp.full((1, 1), 0.1, jnp.float32),
        # actor
        "w1a": n(ks[2], (NUM_INPUTS, HIDDEN)),
        "b1a": jnp.full((1, HIDDEN), 0.1, jnp.float32),
        "w2a": n(ks[3], (HIDDEN, NUM_OUTPUTS)),
        "b2a": jnp.full((1, NUM_OUTPUTS), 0.1, jnp.float32),
        # log_std parameter
        "log_std": jnp.full((1, NUM_OUTPUTS), LOG_STD_INIT, jnp.float32),
    }


def reference_forward_f32(x, p):
    hc = jnp.maximum(x @ p["w1c"] + p["b1c"], 0.0)
    value = hc @ p["w2c"] + p["b2c"]
    ha = jnp.maximum(x @ p["w1a"] + p["b1a"], 0.0)
    mu = jax.nn.softmax(ha @ p["w2a"] + p["b2a"], axis=-1)
    std = jnp.broadcast_to(jnp.exp(p["log_std"]), mu.shape)
    return mu, std, value


def reference_forward_bf16(x, p):
    """Mirrors the kernel's mixed precision (bf16 operands, f32 accumulate)."""
    bf = jnp.bfloat16
    dot = lambda a, b: jnp.dot(a.astype(bf), b.astype(bf),
                               preferred_element_type=jnp.float32)
    hc = jnp.maximum(dot(x, p["w1c"]) + p["b1c"], 0.0)
    value = dot(hc, p["w2c"]) + p["b2c"]
    ha = jnp.maximum(dot(x, p["w1a"]) + p["b1a"], 0.0)
    mu = jax.nn.softmax(dot(ha, p["w2a"]) + p["b2a"], axis=-1)
    std = jnp.broadcast_to(jnp.exp(p["log_std"]), mu.shape)
    return mu, std, value


# TODO(synk): torch.distributions.Normal has no Pallas equivalent; the dist is
# represented by returning (mu, std) exactly as the module parameterizes it.

if __name__ == "__main__":
    key = jax.random.PRNGKey(0)
    kx, kp = jax.random.split(key)
    B = 6                                       # small batch; exercises the masked tail block
    x = jax.random.normal(kx, (B, NUM_INPUTS), dtype=jnp.float32)
    params = init_params(kp)

    fused = jax.tree_util.tree_map(jax.block_until_ready, fuse_params(params))
    mu, std, value = jax.block_until_ready(actor_critic_forward(x, fused))

    assert mu.shape == (B, NUM_OUTPUTS) and value.shape == (B, 1)

    # Tight check vs. a reference using the same bf16 operand precision.
    mu_b, std_b, val_b = reference_forward_bf16(x, params)
    assert jnp.allclose(mu, mu_b, atol=2e-3), "mu mismatch (bf16 ref)"
    assert jnp.allclose(value, val_b, atol=2e-3), "value mismatch (bf16 ref)"
    assert jnp.allclose(std, std_b, atol=1e-6), "std mismatch"

    # Loose semantic check vs. the pure-f32 reference (bf16 quantization noise).
    mu_r, _, val_r = reference_forward_f32(x, params)
    assert jnp.allclose(mu, mu_r, atol=5e-2), "mu mismatch (f32 ref)"
    assert jnp.allclose(value, val_r, atol=5e-2), "value mismatch (f32 ref)"

    # mu rows should now sum to 1 (exact divide in-kernel).
    assert jnp.allclose(jnp.sum(mu, axis=-1), 1.0, atol=1e-5), "softmax not normalized"

    print("KERNEL_OK")
</pallas_src>

<mosaic_0001>
module attributes {stable_mosaic.version = 11 : i64} {
  func.func @actor_critic_kernel(%arg0: i32, %arg1: memref<8x64xf32, #tpu.memory_space<vmem>>, %arg2: memref<64x128xbf16, #tpu.memory_space<vmem>>, %arg3: memref<1x128xf32, #tpu.memory_space<vmem>>, %arg4: memref<128x8xbf16, #tpu.memory_space<vmem>>, %arg5: memref<1x8xf32, #tpu.memory_space<vmem>>, %arg6: memref<8x8xf32, #tpu.memory_space<vmem>>) attributes {dimension_semantics = [#tpu.dimension_semantics<parallel>], iteration_bounds = array<i64: 1>, scalar_prefetch = 0 : i64, scratch_operands = 0 : i64, tpu.core_type = #tpu.core_type<tc>, window_params = [{transform_indices = @transform_0, window_bounds = array<i64: 8, 64>}, {pipeline_mode = #tpu.pipeline_mode<synchronous>, transform_indices = @transform_1, window_bounds = array<i64: 64, 128>}, {pipeline_mode = #tpu.pipeline_mode<synchronous>, transform_indices = @transform_2, window_bounds = array<i64: 1, 128>}, {pipeline_mode = #tpu.pipeline_mode<synchronous>, transform_indices = @transform_3, window_bounds = array<i64: 128, 8>}, {pipeline_mode = #tpu.pipeline_mode<synchronous>, transform_indices = @transform_4, window_bounds = array<i64: 1, 8>}, {transform_indices = @transform_5, window_bounds = array<i64: 8, 8>}]} {
    %c0 = arith.constant 0 : index
    %c0_0 = arith.constant 0 : index
    %0 = vector.load %arg1[%c0, %c0_0] : memref<8x64xf32, #tpu.memory_space<vmem>>, vector<8x64xf32>
    %1 = arith.truncf %0 : vector<8x64xf32> to vector<8x64xbf16>
    %c0_1 = arith.constant 0 : index
    %c0_2 = arith.constant 0 : index
    %2 = vector.load %arg2[%c0_1, %c0_2] : memref<64x128xbf16, #tpu.memory_space<vmem>>, vector<64x128xbf16>
    %cst = arith.constant dense<0.000000e+00> : vector<8x128xf32>
    %3 = tpu.matmul %1, %2, %cst {dimension_numbers = #tpu.dot_dimension_numbers<[1], [0], [0], [1], [0, 0, 1, 1], [], []>} : vector<8x64xbf16>, vector<64x128xbf16>, vector<8x128xf32> -> vector<8x128xf32>
    %c0_3 = arith.constant 0 : index
    %c0_4 = arith.constant 0 : index
    %4 = vector.load %arg3[%c0_3, %c0_4] : memref<1x128xf32, #tpu.memory_space<vmem>>, vector<1x128xf32>
    %5 = vector.broadcast %4 : vector<1x128xf32> to vector<8x128xf32>
    %6 = arith.addf %3, %5 : vector<8x128xf32>
    %cst_5 = arith.constant 0.000000e+00 : f32
    %7 = vector.broadcast %cst_5 : f32 to vector<8x128xf32>
    %8 = arith.maximumf %6, %7 : vector<8x128xf32>
    %9 = arith.truncf %8 : vector<8x128xf32> to vector<8x128xbf16>
    %c0_6 = arith.constant 0 : index
    %c0_7 = arith.constant 0 : index
    %10 = vector.load %arg4[%c0_6, %c0_7] : memref<128x8xbf16, #tpu.memory_space<vmem>>, vector<128x8xbf16>
    %cst_8 = arith.constant dense<0.000000e+00> : vector<8x8xf32>
    %11 = tpu.matmul %9, %10, %cst_8 {dimension_numbers = #tpu.dot_dimension_numbers<[1], [0], [0], [1], [0, 0, 1, 1], [], []>} : vector<8x128xbf16>, vector<128x8xbf16>, vector<8x8xf32> -> vector<8x8xf32>
    %c0_9 = arith.constant 0 : index
    %c0_10 = arith.constant 0 : index
    %12 = vector.load %arg5[%c0_9, %c0_10] : memref<1x8xf32, #tpu.memory_space<vmem>>, vector<1x8xf32>
    %13 = vector.broadcast %12 : vector<1x8xf32> to vector<8x8xf32>
    %14 = arith.addf %11, %13 : vector<8x8xf32>
    %15 = tpu.iota {dimensions = array<i32: 1>} : vector<8x8xi32>
    %c4_i32 = arith.constant 4 : i32
    %16 = vector.broadcast %c4_i32 : i32 to vector<8x8xi32>
    %17 = arith.cmpi slt, %15, %16 : vector<8x8xi32>
    %cst_11 = arith.constant -1.000000e+30 : f32
    %18 = vector.broadcast %cst_11 : f32 to vector<8x8xf32>
    %19 = arith.select %17, %14, %18 : vector<8x8xi1>, vector<8x8xf32>
    %cst_12 = arith.constant dense<0xFF800000> : vector<8xf32>
    %20 = vector.multi_reduction <maximumf>, %19, %cst_12 [1] : vector<8x8xf32> to vector<8xf32>
    %21 = vector.shape_cast %20 : vector<8xf32> to vector<8x1xf32>
    %22 = vector.broadcast %21 : vector<8x1xf32> to vector<8x8xf32>
    %23 = arith.subf %19, %22 : vector<8x8xf32>
    %24 = math.exp %23 : vector<8x8xf32>
    %cst_13 = arith.constant dense<0.000000e+00> : vector<8xf32>
    %25 = vector.multi_reduction <add>, %24, %cst_13 [1] : vector<8x8xf32> to vector<8xf32>
    %26 = vector.shape_cast %25 : vector<8xf32> to vector<8x1xf32>
    %27 = vector.broadcast %26 : vector<8x1xf32> to vector<8x8xf32>
    %28 = arith.divf %24, %27 : vector<8x8xf32>
    %c4_i32_14 = arith.constant 4 : i32
    %29 = vector.broadcast %c4_i32_14 : i32 to vector<8x8xi32>
    %30 = arith.cmpi eq, %15, %29 : vector<8x8xi32>
    %31 = arith.select %30, %14, %28 : vector<8x8xi1>, vector<8x8xf32>
    %c0_15 = arith.constant 0 : index
    %c0_16 = arith.constant 0 : index
    %32 = vector.load %arg6[%c0_15, %c0_16] : memref<8x8xf32, #tpu.memory_space<vmem>>, vector<8x8xf32>
    tpu.vector_store %arg6[%c0_15, %c0_16], %31 {strides = array<i32>} : memref<8x8xf32, #tpu.memory_space<vmem>>, vector<8x8xf32>,
    return
  }
  func.func @transform_0(%arg0: i32) -> (i32, i32) {
    %c0_i32 = arith.constant 0 : i32
    %c0_i32_0 = arith.constant 0 : i32
    return %arg0, %c0_i32 : i32, i32
  }
  func.func @transform_1(%arg0: i32) -> (i32, i32) {
    %c0_i32 = arith.constant 0 : i32
    %c0_i32_0 = arith.constant 0 : i32
    %c0_i32_1 = arith.constant 0 : i32
    return %c0_i32, %c0_i32_0 : i32, i32
  }
  func.func @transform_2(%arg0: i32) -> (i32, i32) {
    %c0_i32 = arith.constant 0 : i32
    %c0_i32_0 = arith.constant 0 : i32
    %c0_i32_1 = arith.constant 0 : i32
    return %c0_i32, %c0_i32_0 : i32, i32
  }
  func.func @transform_3(%arg0: i32) -> (i32, i32) {
    %c0_i32 = arith.constant 0 : i32
    %c0_i32_0 = arith.constant 0 : i32
    %c0_i32_1 = arith.constant 0 : i32
    return %c0_i32, %c0_i32_0 : i32, i32
  }
  func.func @transform_4(%arg0: i32) -> (i32, i32) {
    %c0_i32 = arith.constant 0 : i32
    %c0_i32_0 = arith.constant 0 : i32
    %c0_i32_1 = arith.constant 0 : i32
    return %c0_i32, %c0_i32_0 : i32, i32
  }
  func.func @transform_5(%arg0: i32) -> (i32, i32) {
    %c0_i32 = arith.constant 0 : i32
    %c0_i32_0 = arith.constant 0 : i32
    return %arg0, %c0_i32 : i32, i32
  }
}

module attributes {stable_mosaic.version = 11 : i64} {
  func.func @actor_critic_kernel(%arg0: i32, %arg1: memref<8x64xf32, #tpu.memory_space<vmem>>, %arg2: memref<64x128xbf16, #tpu.memory_space<vmem>>, %arg3: memref<1x128xf32, #tpu.memory_space<vmem>>, %arg4: memref<128x8xbf16, #tpu.memory_space<vmem>>, %arg5: memref<1x8xf32, #tpu.memory_space<vmem>>, %arg6: memref<8x8xf32, #tpu.memory_space<vmem>>) attributes {dimension_semantics = [#tpu.dimension_semantics<parallel>], iteration_bounds = array<i64: 1>, scalar_prefetch = 0 : i64, scratch_operands = 0 : i64, tpu.core_type = #tpu.core_type<tc>, window_params = [{transform_indices = @transform_0, window_bounds = array<i64: 8, 64>}, {pipeline_mode = #tpu.pipeline_mode<synchronous>, transform_indices = @transform_1, window_bounds = array<i64: 64, 128>}, {pipeline_mode = #tpu.pipeline_mode<synchronous>, transform_indices = @transform_2, window_bounds = array<i64: 1, 128>}, {pipeline_mode = #tpu.pipeline_mode<synchronous>, transform_indices = @transform_3, window_bounds = array<i64: 128, 8>}, {pipeline_mode = #tpu.pipeline_mode<synchronous>, transform_indices = @transform_4, window_bounds = array<i64: 1, 8>}, {transform_indices = @transform_5, window_bounds = array<i64: 8, 8>}]} {
    %c0 = arith.constant 0 : index
    %c0_0 = arith.constant 0 : index
    %0 = vector.load %arg1[%c0, %c0_0] : memref<8x64xf32, #tpu.memory_space<vmem>>, vector<8x64xf32>
    %1 = arith.truncf %0 : vector<8x64xf32> to vector<8x64xbf16>
    %c0_1 = arith.constant 0 : index
    %c0_2 = arith.constant 0 : index
    %2 = vector.load %arg2[%c0_1, %c0_2] : memref<64x128xbf16, #tpu.memory_space<vmem>>, vector<64x128xbf16>
    %cst = arith.constant dense<0.000000e+00> : vector<8x128xf32>
    %3 = tpu.matmul %1, %2, %cst {dimension_numbers = #tpu.dot_dimension_numbers<[1], [0], [0], [1], [0, 0, 1, 1], [], []>} : vector<8x64xbf16>, vector<64x128xbf16>, vector<8x128xf32> -> vector<8x128xf32>
    %c0_3 = arith.constant 0 : index
    %c0_4 = arith.constant 0 : index
    %4 = vector.load %arg3[%c0_3, %c0_4] : memref<1x128xf32, #tpu.memory_space<vmem>>, vector<1x128xf32>
    %5 = vector.broadcast %4 : vector<1x128xf32> to vector<8x128xf32>
    %6 = arith.addf %3, %5 : vector<8x128xf32>
    %cst_5 = arith.constant 0.000000e+00 : f32
    %7 = vector.broadcast %cst_5 : f32 to vector<8x128xf32>
    %8 = arith.maximumf %6, %7 : vector<8x128xf32>
    %9 = arith.truncf %8 : vector<8x128xf32> to vector<8x128xbf16>
    %c0_6 = arith.constant 0 : index
    %c0_7 = arith.constant 0 : index
    %10 = vector.load %arg4[%c0_6, %c0_7] : memref<128x8xbf16, #tpu.memory_space<vmem>>, vector<128x8xbf16>
    %cst_8 = arith.constant dense<0.000000e+00> : vector<8x8xf32>
    %11 = tpu.matmul %9, %10, %cst_8 {dimension_numbers = #tpu.dot_dimension_numbers<[1], [0], [0], [1], [0, 0, 1, 1], [], []>} : vector<8x128xbf16>, vector<128x8xbf16>, vector<8x8xf32> -> vector<8x8xf32>
    %c0_9 = arith.constant 0 : index
    %c0_10 = arith.constant 0 : index
    %12 = vector.load %arg5[%c0_9, %c0_10] : memref<1x8xf32, #tpu.memory_space<vmem>>, vector<1x8xf32>
    %13 = vector.broadcast %12 : vector<1x8xf32> to vector<8x8xf32>
    %14 = arith.addf %11, %13 : vector<8x8xf32>
    %15 = tpu.iota {dimensions = array<i32: 1>} : vector<8x8xi32>
    %c4_i32 = arith.constant 4 : i32
    %16 = vector.broadcast %c4_i32 : i32 to vector<8x8xi32>
    %17 = arith.cmpi slt, %15, %16 : vector<8x8xi32>
    %cst_11 = arith.constant -1.000000e+30 : f32
    %18 = vector.broadcast %cst_11 : f32 to vector<8x8xf32>
    %19 = arith.select %17, %14, %18 : vector<8x8xi1>, vector<8x8xf32>
    %cst_12 = arith.constant dense<0xFF800000> : vector<8xf32>
    %20 = vector.multi_reduction <maximumf>, %19, %cst_12 [1] : vector<8x8xf32> to vector<8xf32>
    %21 = vector.shape_cast %20 : vector<8xf32> to vector<8x1xf32>
    %22 = vector.broadcast %21 : vector<8x1xf32> to vector<8x8xf32>
    %23 = arith.subf %19, %22 : vector<8x8xf32>
    %24 = math.exp %23 : vector<8x8xf32>
    %cst_13 = arith.constant dense<0.000000e+00> : vector<8xf32>
    %25 = vector.multi_reduction <add>, %24, %cst_13 [1] : vector<8x8xf32> to vector<8xf32>
    %26 = vector.shape_cast %25 : vector<8xf32> to vector<8x1xf32>
    %27 = vector.broadcast %26 : vector<8x1xf32> to vector<8x8xf32>
    %28 = arith.divf %24, %27 : vector<8x8xf32>
    %c4_i32_14 = arith.constant 4 : i32
    %29 = vector.broadcast %c4_i32_14 : i32 to vector<8x8xi32>
    %30 = arith.cmpi eq, %15, %29 : vector<8x8xi32>
    %31 = arith.select %30, %14, %28 : vector<8x8xi1>, vector<8x8xf32>
    %c0_15 = arith.constant 0 : index
    %c0_16 = arith.constant 0 : index
    %32 = vector.load %arg6[%c0_15, %c0_16] : memref<8x8xf32, #tpu.memory_space<vmem>>, vector<8x8xf32>
    tpu.vector_store %arg6[%c0_15, %c0_16], %31 {strides = array<i32>} : memref<8x8xf32, #tpu.memory_space<vmem>>, vector<8x8xf32>,
    return
  }
  func.func @transform_0(%arg0: i32) -> (i32, i32) {
    %c0_i32 = arith.constant 0 : i32
    %c0_i32_0 = arith.constant 0 : i32
    return %arg0, %c0_i32 : i32, i32
  }
  func.func @transform_1(%arg0: i32) -> (i32, i32) {
    %c0_i32 = arith.constant 0 : i32
    %c0_i32_0 = arith.constant 0 : i32
    %c0_i32_1 = arith.constant 0 : i32
    return %c0_i32, %c0_i32_0 : i32, i32
  }
  func.func @transform_2(%arg0: i32) -> (i32, i32) {
    %c0_i32 = arith.constant 0 : i32
    %c0_i32_0 = arith.constant 0 : i32
    %c0_i32_1 = arith.constant 0 : i32
    return %c0_i32, %c0_i32_0 : i32, i32
  }
  func.func @transform_3(%arg0: i32) -> (i32, i32) {
    %c0_i32 = arith.constant 0 : i32
    %c0_i32_0 = arith.constant 0 : i32
    %c0_i32_1 = arith.constant 0 : i32
    return %c0_i32, %c0_i32_0 : i32, i32
  }
  func.func @transform_4(%arg0: i32) -> (i32, i32) {
    %c0_i32 = arith.constant 0 : i32
    %c0_i32_0 = arith.constant 0 : i32
    %c0_i32_1 = arith.constant 0 : i32
    return %c0_i32, %c0_i32_0 : i32, i32
  }
  func.func @transform_5(%arg0: i32) -> (i32, i32) {
    %c0_i32 = arith.constant 0 : i32
    %c0_i32_0 = arith.constant 0 : i32
    return %arg0, %c0_i32 : i32, i32
  }
}

</mosaic_0001>

<llo_original>
// kernel: tpu_custom_call.1
$region0: #{tpu_custom_call.1}
  #allocation0 [shape = 'u32[]', space=smem, size = 0x4, offset = 0x4, fixed_abs, tag = 'smem constant byte address 0x4 - core index']
  #allocation1 [shape = 'u32[144,128]{1,0:T(1,128)}', space=vmem, size = 0x12000, scoped, tag = 'internal scratch']
  %s0 = inlined_call_operand.vmem [shape: f32[6,64], index: 0, kind: input, shape index: {}]
  %s1 = inlined_call_operand.vmem [shape: bf16[64,128], index: 1, kind: input, shape index: {}]
  %s2 = inlined_call_operand.vmem [shape: f32[1,128], index: 2, kind: input, shape index: {}]
  %s3 = inlined_call_operand.vmem [shape: bf16[128,8], index: 3, kind: input, shape index: {}]
  %s4 = inlined_call_operand.vmem [shape: f32[1,8], index: 4, kind: input, shape index: {}]
  %s5 = inlined_call_operand.hbm [shape: f32[6,8], index: 5, kind: output, shape index: {}]
  %s6 = sld [smem:[#allocation0]]
  $region30: #{tpu_custom_call.1} parent=0
    _
  %s8 = ssub.s32 1, %s6
  %s9 = scalar_select 0, %s8, %s6
  $region1: #{tpu_custom_call.1} parent=0
    #allocation2 [shape = 'u8[4096]{0}', space=vmem, size = 0x1000, scoped, tag = 'output window, operand 0, single buffered']
    #allocation3 [shape = 's32[1]{0}', space=sflag, size = 0x4, scoped, tag = 'scoped memory for tpu_custom_call.1']
    %10 = vsyncpa [#allocation3], 0
    // Predicated region
    $region2: #{tpu_custom_call.1} parent=1 // pred_check
      _
    $region3: #{tpu_custom_call.1} parent=1 // pred_check_branch
      %12 = sbr.rel (0) target = $region5
    $region4: #{tpu_custom_call.1} parent=1 // pred_region
      _
    $region5: #{tpu_custom_call.1} parent=1 // pred_fallthru
      _
    // Predicated region
    $region6: #{tpu_custom_call.1} parent=1 // pred_check
      _
    $region7: #{tpu_custom_call.1} parent=1 // pred_check_branch
      %14 = sbr.rel (0) target = $region9
    $region8: #{tpu_custom_call.1} parent=1 // pred_region
      _
    $region9: #{tpu_custom_call.1} parent=1 // pred_fallthru
      _
    // Predicated region
    $region10: #{tpu_custom_call.1} parent=1 // pred_check
      _
    $region11: #{tpu_custom_call.1} parent=1 // pred_check_branch
      %16 = sbr.rel (0) target = $region13
    $region12: #{tpu_custom_call.1} parent=1 // pred_region
      _
    $region13: #{tpu_custom_call.1} parent=1 // pred_fallthru
      _
    // Predicated region
    $region14: #{tpu_custom_call.1} parent=1 // pred_check
      _
    $region15: #{tpu_custom_call.1} parent=1 // pred_check_branch
      %18 = sbr.rel (0) target = $region17
    $region16: #{tpu_custom_call.1} parent=1 // pred_region
      _
    $region17: #{tpu_custom_call.1} parent=1 // pred_fallthru
      _
    // Predicated region
    $region18: #{tpu_custom_call.1} parent=1 // pred_check
      _
    $region19: #{tpu_custom_call.1} parent=1 // pred_check_branch
      %20 = sbr.rel (0) target = $region21
    $region20: #{tpu_custom_call.1} parent=1 // pred_region
      _
    $region21: #{tpu_custom_call.1} parent=1 // pred_fallthru
      _
    %v22 = vld [vmem:[%s0] sm:$0xff]
    %v23 = vpack.c.bf16 %v22, %v22
    %v24 = vld [vmem:[%s1] sm:$0xf]
    %v25 = vld [vmem:[%s1 + $0x4] sm:$0xf]
    %v26 = vld [vmem:[%s1 + $0x8] sm:$0xf]
    %v27 = vld [vmem:[%s1 + $0xc] sm:$0xf]
    %v28 = vld [vmem:[%s1 + $0x10] sm:$0xf]
    %v29 = vld [vmem:[%s1 + $0x14] sm:$0xf]
    %v30 = vld [vmem:[%s1 + $0x18] sm:$0xf]
    %v31 = vld [vmem:[%s1 + $0x1c] sm:$0xf]
    %v32 = vld [vmem:[%s2] sm:$0x1]
    %v34 = vlaneseq
    %v35 = vshrl.u32 %v34, 7
    %v36 = vsub.s32 0, %v35
    %v37 = vrot.slane %v32, %v36
    %v47 = vunpack.c.l.b16 %v24
    %v48 = vunpack.c.l.b16 %v25
    %v49 = vunpack.c.l.b16 %v26
    %v50 = vunpack.c.l.b16 %v27
    %v51 = vunpack.c.l.b16 %v28
    %v52 = vunpack.c.l.b16 %v29
    %v53 = vunpack.c.l.b16 %v30
    %v54 = vunpack.c.l.b16 %v31
    %v55 = vpack.c.b16 %v48, %v47
    %v56 = vpack.c.b16 %v50, %v49
    %v57 = vpack.c.b16 %v52, %v51
    %v58 = vpack.c.b16 %v54, %v53
    %vm63 = vcmask 523264
    %v65 = vsel %vm63, %v23, 0
    %67 = vmatprep.subr.bf16.mxu0 0
    %68 = vmatpush1.bf16.msra.mxu0 %v55
    %69 = vmatprep.subr.bf16.mxu0 0
    %70 = vmatpush1.bf16.msra.mxu0 %v56
    %71 = vmatprep.subr.bf16.mxu0 0
    %72 = vmatpush1.bf16.msra.mxu0 %v57
    %73 = vmatprep.subr.bf16.mxu0 0
    %74 = vmatpush1.bf16.msra.mxu0 %v58
    %75 = vmatprep.subr.bf16.mxu0 0
    %76 = vmatpush1.bf16.msra.mxu0 0
    %77 = vmatprep.subr.bf16.mxu0 0
    %78 = vmatpush1.bf16.msra.mxu0 0
    %79 = vmatprep.subr.bf16.mxu0 0
    %80 = vmatpush1.bf16.msra.mxu0 0
    %81 = vmatprep.subr.bf16.mxu0 0
    %82 = vmatpush1.bf16.msra.mxu0 0
    %83 = vmatprep.subr.bf16.mxu0 0
    %84 = vmatpush1.bf16.msra.mxu0 0
    %85 = vmatprep.subr.bf16.mxu0 0
    %86 = vmatpush1.bf16.msra.mxu0 0
    %87 = vmatprep.subr.bf16.mxu0 0
    %88 = vmatpush1.bf16.msra.mxu0 0
    %89 = vmatprep.subr.bf16.mxu0 0
    %90 = vmatpush1.bf16.msra.mxu0 0
    %91 = vmatprep.subr.bf16.mxu0 0
    %92 = vmatpush1.bf16.msra.mxu0 0
    %93 = vmatprep.subr.bf16.mxu0 0
    %94 = vmatpush1.bf16.msra.mxu0 0
    %95 = vmatprep.subr.bf16.mxu0 0
    %96 = vmatpush1.bf16.msra.mxu0 0
    %97 = vmatprep.subr.bf16.mxu0 0
    %98 = vmatpush1.bf16.msra.mxu0 0
    %99 = vmatprep.mubr.bf16.mxu0 0
    %100 = vmatmul.mubr.bf16.gmra.mrb[0].mxu0 %v65
    %v101 = vpop.f32.mrb[0].mxu0
    %v102 = vadd.f32 %v37, %v101
    %v103 = vpop.f32.mrb[0].mxu0
    %v104 = vpop.f32.mrb[0].mxu0
    %v105 = vpop.f32.mrb[0].mxu0
    %106 = vdwg.mxu0
    %v107 = vmax.f32 %v102, 0.0
    %v108 = vpack.c.bf16 %v107, %v107
    %v109 = vld [vmem:[%s3] sm:$0xf]
    %v110 = vld [vmem:[%s3 + $0x4] sm:$0xf]
    %v111 = vld [vmem:[%s3 + $0x8] sm:$0xf]
    %v112 = vld [vmem:[%s3 + $0xc] sm:$0xf]
    %v113 = vld [vmem:[%s3 + $0x10] sm:$0xf]
    %v114 = vld [vmem:[%s3 + $0x14] sm:$0xf]
    %v115 = vld [vmem:[%s3 + $0x18] sm:$0xf]
    %v116 = vld [vmem:[%s3 + $0x1c] sm:$0xf]
    %v117 = vld [vmem:[%s3 + $0x20] sm:$0xf]
    %v118 = vld [vmem:[%s3 + $0x24] sm:$0xf]
    %v119 = vld [vmem:[%s3 + $0x28] sm:$0xf]
    %v120 = vld [vmem:[%s3 + $0x2c] sm:$0xf]
    %v121 = vld [vmem:[%s3 + $0x30] sm:$0xf]
    %v122 = vld [vmem:[%s3 + $0x34] sm:$0xf]
    %v123 = vld [vmem:[%s3 + $0x38] sm:$0xf]
    %v124 = vld [vmem:[%s3 + $0x3c] sm:$0xf]
    %v125 = vld [vmem:[%s4] sm:$0x1]
    %v127 = vlaneseq
    %v128 = vshrl.u32 %v127, 7
    %v129 = vsub.s32 0, %v128
    %v130 = vrot.slane %v125, %v129
    %v148 = vunpack.c.l.b16 %v109
    %v149 = vunpack.c.l.b16 %v110
    %v150 = vunpack.c.l.b16 %v111
    %v151 = vunpack.c.l.b16 %v112
    %v152 = vunpack.c.l.b16 %v113
    %v153 = vunpack.c.l.b16 %v114
    %v154 = vunpack.c.l.b16 %v115
    %v155 = vunpack.c.l.b16 %v116
    %v156 = vunpack.c.l.b16 %v117
    %v157 = vunpack.c.l.b16 %v118
    %v158 = vunpack.c.l.b16 %v119
    %v159 = vunpack.c.l.b16 %v120
    %v160 = vunpack.c.l.b16 %v121
    %v161 = vunpack.c.l.b16 %v122
    %v162 = vunpack.c.l.b16 %v123
    %v163 = vunpack.c.l.b16 %v124
    %v164 = vpack.c.b16 %v149, %v148
    %v165 = vpack.c.b16 %v151, %v150
    %v166 = vpack.c.b16 %v153, %v152
    %v167 = vpack.c.b16 %v155, %v154
    %v168 = vpack.c.b16 %v157, %v156
    %v169 = vpack.c.b16 %v159, %v158
    %v170 = vpack.c.b16 %v161, %v160
    %v171 = vpack.c.b16 %v163, %v162
    %180 = vmatprep.subr.bf16.mxu0 0
    %181 = vmatpush1.bf16.msra.mxu0 %v164
    %182 = vmatprep.subr.bf16.mxu0 0
    %183 = vmatpush1.bf16.msra.mxu0 %v165
    %184 = vmatprep.subr.bf16.mxu0 0
    %185 = vmatpush1.bf16.msra.mxu0 %v166
    %186 = vmatprep.subr.bf16.mxu0 0
    %187 = vmatpush1.bf16.msra.mxu0 %v167
    %188 = vmatprep.subr.bf16.mxu0 0
    %189 = vmatpush1.bf16.msra.mxu0 %v168
    %190 = vmatprep.subr.bf16.mxu0 0
    %191 = vmatpush1.bf16.msra.mxu0 %v169
    %192 = vmatprep.subr.bf16.mxu0 0
    %193 = vmatpush1.bf16.msra.mxu0 %v170
    %194 = vmatprep.subr.bf16.mxu0 0
    %195 = vmatpush1.bf16.msra.mxu0 %v171
    %196 = vmatprep.subr.bf16.mxu0 0
    %197 = vmatpush1.bf16.msra.mxu0 0
    %198 = vmatprep.subr.bf16.mxu0 0
    %199 = vmatpush1.bf16.msra.mxu0 0
    %200 = vmatprep.subr.bf16.mxu0 0
    %201 = vmatpush1.bf16.msra.mxu0 0
    %202 = vmatprep.subr.bf16.mxu0 0
    %203 = vmatpush1.bf16.msra.mxu0 0
    %204 = vmatprep.subr.bf16.mxu0 0
    %205 = vmatpush1.bf16.msra.mxu0 0
    %206 = vmatprep.subr.bf16.mxu0 0
    %207 = vmatpush1.bf16.msra.mxu0 0
    %208 = vmatprep.subr.bf16.mxu0 0
    %209 = vmatpush1.bf16.msra.mxu0 0
    %210 = vmatprep.subr.bf16.mxu0 0
    %211 = vmatpush1.bf16.msra.mxu0 0
    %212 = vmatprep.mubr.bf16.mxu0 0
    %213 = vmatmul.mubr.bf16.gmra.mrb[0].mxu0 %v108
    %v214 = vpop.f32.mrb[0].mxu0
    %v215 = vadd.f32 %v130, %v214
    %v216 = vpop.f32.mrb[0].mxu0
    %v217 = vpop.f32.mrb[0].mxu0
    %v218 = vpop.f32.mrb[0].mxu0
    %219 = vdwg.mxu0
    %v220 = vlaneseq
    %v221 = vand.u32 %v220, 127
    %vm222 = vcmp.lt.s32.totalorder %v221, 4
    %v223 = vsel %vm222, %v215, -1e+30
    %vm224 = vcmask 64512
    %v225 = vsel %vm224, %v223, -inf
    %226 = vmax.xlane.f32.xlu0 %v225
    %v227 = vpop.xlane.xlu0 %226
    %v228 = vsub.f32 %v223, %v227
    %v229 = vmul.f32 %v228, 1.442695
    %v230 = vpow.pop %v229
    %v231 = vsel %vm224, %v230, 0.0
    %232 = vadd.xlane.f32.xlu0 %v231
    %v233 = vpop.xlane.xlu0 %232
    %v234 = vrcp.pop %v233
    %v235 = vmul.f32 %v230, %v234
    %vm236 = vcmp.eq.s32.totalorder %v221, 4
    %v237 = vsel %vm236, %v215, %v235
    %238 = vst.msk [vmem:[#allocation2] sm:$0xff] %vm224, %v237
    // Predicated region
    $region22: #{tpu_custom_call.1} parent=1 // pred_check
      _
    $region23: #{tpu_custom_call.1} parent=1 // pred_check_branch
      %240 = sbr.rel (0) target = $region25
    $region24: #{tpu_custom_call.1} parent=1 // pred_region
      %s242 = ssub.s32 128, 128
      %243 = vsyncadd [#allocation3], %s242
      %s245 = sshll.u32 [#allocation2], 4
      %s246 = int_to_ptr.vmem [resolvable:$true] %s245
      %248 = dma.vmem_to_hbm [thread:$0]  %s246, 128, %s5, [#allocation3]
    $region25: #{tpu_custom_call.1} parent=1 // pred_fallthru
      _
    // Predicated region
    $region26: #{tpu_custom_call.1} parent=1 // pred_check
      _
    $region27: #{tpu_custom_call.1} parent=1 // pred_check_branch
      %250 = sbr.rel (0) target = $region29
    $region28: #{tpu_custom_call.1} parent=1 // pred_region
      %251 = dma.done [#allocation3], 128
    $region29: #{tpu_custom_call.1} parent=1 // pred_fallthru
      _
    %252 = vsyncpa [#allocation3], 1

// kernel: tpu_custom_call.1
$region0: #{tpu_custom_call.1}
  #allocation0 [shape = 'u32[]', space=smem, size = 0x4, offset = 0x4, fixed_abs, tag = 'smem constant byte address 0x4 - core index']
  #allocation1 [shape = 'u32[144,128]{1,0:T(1,128)}', space=vmem, size = 0x12000, scoped, tag = 'internal scratch']
  %s0 = inlined_call_operand.vmem [shape: f32[6,64], index: 0, kind: input, shape index: {}]
  %s1 = inlined_call_operand.vmem [shape: bf16[64,128], index: 1, kind: input, shape index: {}]
  %s2 = inlined_call_operand.vmem [shape: f32[1,128], index: 2, kind: input, shape index: {}]
  %s3 = inlined_call_operand.vmem [shape: bf16[128,8], index: 3, kind: input, shape index: {}]
  %s4 = inlined_call_operand.vmem [shape: f32[1,8], index: 4, kind: input, shape index: {}]
  %s5 = inlined_call_operand.hbm [shape: f32[6,8], index: 5, kind: output, shape index: {}]
  %s6 = sld [smem:[#allocation0]]
  $region30: #{tpu_custom_call.1} parent=0
    _
  %s8 = ssub.s32 1, %s6
  %s9 = scalar_select 0, %s8, %s6
  $region1: #{tpu_custom_call.1} parent=0
    #allocation2 [shape = 'u8[4096]{0}', space=vmem, size = 0x1000, scoped, tag = 'output window, operand 0, single buffered']
    #allocation3 [shape = 's32[1]{0}', space=sflag, size = 0x4, scoped, tag = 'scoped memory for tpu_custom_call.1']
    %10 = vsyncpa [#allocation3], 0
    // Predicated region
    $region2: #{tpu_custom_call.1} parent=1 // pred_check
      _
    $region3: #{tpu_custom_call.1} parent=1 // pred_check_branch
      %12 = sbr.rel (0) target = $region5
    $region4: #{tpu_custom_call.1} parent=1 // pred_region
      _
    $region5: #{tpu_custom_call.1} parent=1 // pred_fallthru
      _
    // Predicated region
    $region6: #{tpu_custom_call.1} parent=1 // pred_check
      _
    $region7: #{tpu_custom_call.1} parent=1 // pred_check_branch
      %14 = sbr.rel (0) target = $region9
    $region8: #{tpu_custom_call.1} parent=1 // pred_region
      _
    $region9: #{tpu_custom_call.1} parent=1 // pred_fallthru
      _
    // Predicated region
    $region10: #{tpu_custom_call.1} parent=1 // pred_check
      _
    $region11: #{tpu_custom_call.1} parent=1 // pred_check_branch
      %16 = sbr.rel (0) target = $region13
    $region12: #{tpu_custom_call.1} parent=1 // pred_region
      _
    $region13: #{tpu_custom_call.1} parent=1 // pred_fallthru
      _
    // Predicated region
    $region14: #{tpu_custom_call.1} parent=1 // pred_check
      _
    $region15: #{tpu_custom_call.1} parent=1 // pred_check_branch
      %18 = sbr.rel (0) target = $region17
    $region16: #{tpu_custom_call.1} parent=1 // pred_region
      _
    $region17: #{tpu_custom_call.1} parent=1 // pred_fallthru
      _
    // Predicated region
    $region18: #{tpu_custom_call.1} parent=1 // pred_check
      _
    $region19: #{tpu_custom_call.1} parent=1 // pred_check_branch
      %20 = sbr.rel (0) target = $region21
    $region20: #{tpu_custom_call.1} parent=1 // pred_region
      _
    $region21: #{tpu_custom_call.1} parent=1 // pred_fallthru
      _
    %v22 = vld [vmem:[%s0] sm:$0xff]
    %v23 = vpack.c.bf16 %v22, %v22
    %v24 = vld [vmem:[%s1] sm:$0xf]
    %v25 = vld [vmem:[%s1 + $0x4] sm:$0xf]
    %v26 = vld [vmem:[%s1 + $0x8] sm:$0xf]
    %v27 = vld [vmem:[%s1 + $0xc] sm:$0xf]
    %v28 = vld [vmem:[%s1 + $0x10] sm:$0xf]
    %v29 = vld [vmem:[%s1 + $0x14] sm:$0xf]
    %v30 = vld [vmem:[%s1 + $0x18] sm:$0xf]
    %v31 = vld [vmem:[%s1 + $0x1c] sm:$0xf]
    %v32 = vld [vmem:[%s2] sm:$0x1]
    %v34 = vlaneseq
    %v35 = vshrl.u32 %v34, 7
    %v36 = vsub.s32 0, %v35
    %v37 = vrot.slane %v32, %v36
    %v47 = vunpack.c.l.b16 %v24
    %v48 = vunpack.c.l.b16 %v25
    %v49 = vunpack.c.l.b16 %v26
    %v50 = vunpack.c.l.b16 %v27
    %v51 = vunpack.c.l.b16 %v28
    %v52 = vunpack.c.l.b16 %v29
    %v53 = vunpack.c.l.b16 %v30
    %v54 = vunpack.c.l.b16 %v31
    %v55 = vpack.c.b16 %v48, %v47
    %v56 = vpack.c.b16 %v50, %v49
    %v57 = vpack.c.b16 %v52, %v51
    %v58 = vpack.c.b16 %v54, %v53
    %vm63 = vcmask 523264
    %v65 = vsel %vm63, %v23, 0
    %67 = vmatprep.subr.bf16.mxu0 0
    %68 = vmatpush1.bf16.msra.mxu0 %v55
    %69 = vmatprep.subr.bf16.mxu0 0
    %70 = vmatpush1.bf16.msra.mxu0 %v56
    %71 = vmatprep.subr.bf16.mxu0 0
    %72 = vmatpush1.bf16.msra.mxu0 %v57
    %73 = vmatprep.subr.bf16.mxu0 0
    %74 = vmatpush1.bf16.msra.mxu0 %v58
    %75 = vmatprep.subr.bf16.mxu0 0
    %76 = vmatpush1.bf16.msra.mxu0 0
    %77 = vmatprep.subr.bf16.mxu0 0
    %78 = vmatpush1.bf16.msra.mxu0 0
    %79 = vmatprep.subr.bf16.mxu0 0
    %80 = vmatpush1.bf16.msra.mxu0 0
    %81 = vmatprep.subr.bf16.mxu0 0
    %82 = vmatpush1.bf16.msra.mxu0 0
    %83 = vmatprep.subr.bf16.mxu0 0
    %84 = vmatpush1.bf16.msra.mxu0 0
    %85 = vmatprep.subr.bf16.mxu0 0
    %86 = vmatpush1.bf16.msra.mxu0 0
    %87 = vmatprep.subr.bf16.mxu0 0
    %88 = vmatpush1.bf16.msra.mxu0 0
    %89 = vmatprep.subr.bf16.mxu0 0
    %90 = vmatpush1.bf16.msra.mxu0 0
    %91 = vmatprep.subr.bf16.mxu0 0
    %92 = vmatpush1.bf16.msra.mxu0 0
    %93 = vmatprep.subr.bf16.mxu0 0
    %94 = vmatpush1.bf16.msra.mxu0 0
    %95 = vmatprep.subr.bf16.mxu0 0
    %96 = vmatpush1.bf16.msra.mxu0 0
    %97 = vmatprep.subr.bf16.mxu0 0
    %98 = vmatpush1.bf16.msra.mxu0 0
    %99 = vmatprep.mubr.bf16.mxu0 0
    %100 = vmatmul.mubr.bf16.gmra.mrb[0].mxu0 %v65
    %v101 = vpop.f32.mrb[0].mxu0
    %v102 = vadd.f32 %v37, %v101
    %v103 = vpop.f32.mrb[0].mxu0
    %v104 = vpop.f32.mrb[0].mxu0
    %v105 = vpop.f32.mrb[0].mxu0
    %106 = vdwg.mxu0
    %v107 = vmax.f32 %v102, 0.0
    %v108 = vpack.c.bf16 %v107, %v107
    %v109 = vld [vmem:[%s3] sm:$0xf]
    %v110 = vld [vmem:[%s3 + $0x4] sm:$0xf]
    %v111 = vld [vmem:[%s3 + $0x8] sm:$0xf]
    %v112 = vld [vmem:[%s3 + $0xc] sm:$0xf]
    %v113 = vld [vmem:[%s3 + $0x10] sm:$0xf]
    %v114 = vld [vmem:[%s3 + $0x14] sm:$0xf]
    %v115 = vld [vmem:[%s3 + $0x18] sm:$0xf]
    %v116 = vld [vmem:[%s3 + $0x1c] sm:$0xf]
    %v117 = vld [vmem:[%s3 + $0x20] sm:$0xf]
    %v118 = vld [vmem:[%s3 + $0x24] sm:$0xf]
    %v119 = vld [vmem:[%s3 + $0x28] sm:$0xf]
    %v120 = vld [vmem:[%s3 + $0x2c] sm:$0xf]
    %v121 = vld [vmem:[%s3 + $0x30] sm:$0xf]
    %v122 = vld [vmem:[%s3 + $0x34] sm:$0xf]
    %v123 = vld [vmem:[%s3 + $0x38] sm:$0xf]
    %v124 = vld [vmem:[%s3 + $0x3c] sm:$0xf]
    %v125 = vld [vmem:[%s4] sm:$0x1]
    %v127 = vlaneseq
    %v128 = vshrl.u32 %v127, 7
    %v129 = vsub.s32 0, %v128
    %v130 = vrot.slane %v125, %v129
    %v148 = vunpack.c.l.b16 %v109
    %v149 = vunpack.c.l.b16 %v110
    %v150 = vunpack.c.l.b16 %v111
    %v151 = vunpack.c.l.b16 %v112
    %v152 = vunpack.c.l.b16 %v113
    %v153 = vunpack.c.l.b16 %v114
    %v154 = vunpack.c.l.b16 %v115
    %v155 = vunpack.c.l.b16 %v116
    %v156 = vunpack.c.l.b16 %v117
    %v157 = vunpack.c.l.b16 %v118
    %v158 = vunpack.c.l.b16 %v119
    %v159 = vunpack.c.l.b16 %v120
    %v160 = vunpack.c.l.b16 %v121
    %v161 = vunpack.c.l.b16 %v122
    %v162 = vunpack.c.l.b16 %v123
    %v163 = vunpack.c.l.b16 %v124
    %v164 = vpack.c.b16 %v149, %v148
    %v165 = vpack.c.b16 %v151, %v150
    %v166 = vpack.c.b16 %v153, %v152
    %v167 = vpack.c.b16 %v155, %v154
    %v168 = vpack.c.b16 %v157, %v156
    %v169 = vpack.c.b16 %v159, %v158
    %v170 = vpack.c.b16 %v161, %v160
    %v171 = vpack.c.b16 %v163, %v162
    %180 = vmatprep.subr.bf16.mxu0 0
    %181 = vmatpush1.bf16.msra.mxu0 %v164
    %182 = vmatprep.subr.bf16.mxu0 0
    %183 = vmatpush1.bf16.msra.mxu0 %v165
    %184 = vmatprep.subr.bf16.mxu0 0
    %185 = vmatpush1.bf16.msra.mxu0 %v166
    %186 = vmatprep.subr.bf16.mxu0 0
    %187 = vmatpush1.bf16.msra.mxu0 %v167
    %188 = vmatprep.subr.bf16.mxu0 0
    %189 = vmatpush1.bf16.msra.mxu0 %v168
    %190 = vmatprep.subr.bf16.mxu0 0
    %191 = vmatpush1.bf16.msra.mxu0 %v169
    %192 = vmatprep.subr.bf16.mxu0 0
    %193 = vmatpush1.bf16.msra.mxu0 %v170
    %194 = vmatprep.subr.bf16.mxu0 0
    %195 = vmatpush1.bf16.msra.mxu0 %v171
    %196 = vmatprep.subr.bf16.mxu0 0
    %197 = vmatpush1.bf16.msra.mxu0 0
    %198 = vmatprep.subr.bf16.mxu0 0
    %199 = vmatpush1.bf16.msra.mxu0 0
    %200 = vmatprep.subr.bf16.mxu0 0
    %201 = vmatpush1.bf16.msra.mxu0 0
    %202 = vmatprep.subr.bf16.mxu0 0
    %203 = vmatpush1.bf16.msra.mxu0 0
    %204 = vmatprep.subr.bf16.mxu0 0
    %205 = vmatpush1.bf16.msra.mxu0 0
    %206 = vmatprep.subr.bf16.mxu0 0
    %207 = vmatpush1.bf16.msra.mxu0 0
    %208 = vmatprep.subr.bf16.mxu0 0
    %209 = vmatpush1.bf16.msra.mxu0 0
    %210 = vmatprep.subr.bf16.mxu0 0
    %211 = vmatpush1.bf16.msra.mxu0 0
    %212 = vmatprep.mubr.bf16.mxu0 0
    %213 = vmatmul.mubr.bf16.gmra.mrb[0].mxu0 %v108
    %v214 = vpop.f32.mrb[0].mxu0
    %v215 = vadd.f32 %v130, %v214
    %v216 = vpop.f32.mrb[0].mxu0
    %v217 = vpop.f32.mrb[0].mxu0
    %v218 = vpop.f32.mrb[0].mxu0
    %219 = vdwg.mxu0
    %v220 = vlaneseq
    %v221 = vand.u32 %v220, 127
    %vm222 = vcmp.lt.s32.totalorder %v221, 4
    %v223 = vsel %vm222, %v215, -1e+30
    %vm224 = vcmask 64512
    %v225 = vsel %vm224, %v223, -inf
    %226 = vmax.xlane.f32.xlu0 %v225
    %v227 = vpop.xlane.xlu0 %226
    %v228 = vsub.f32 %v223, %v227
    %v229 = vmul.f32 %v228, 1.442695
    %v230 = vpow.pop %v229
    %v231 = vsel %vm224, %v230, 0.0
    %232 = vadd.xlane.f32.xlu0 %v231
    %v233 = vpop.xlane.xlu0 %232
    %v234 = vrcp.pop %v233
    %v235 = vmul.f32 %v230, %v234
    %vm236 = vcmp.eq.s32.totalorder %v221, 4
    %v237 = vsel %vm236, %v215, %v235
    %238 = vst.msk [vmem:[#allocation2] sm:$0xff] %vm224, %v237
    // Predicated region
    $region22: #{tpu_custom_call.1} parent=1 // pred_check
      _
    $region23: #{tpu_custom_call.1} parent=1 // pred_check_branch
      %240 = sbr.rel (0) target = $region25
    $region24: #{tpu_custom_call.1} parent=1 // pred_region
      %s242 = ssub.s32 128, 128
      %243 = vsyncadd [#allocation3], %s242
      %s245 = sshll.u32 [#allocation2], 4
      %s246 = int_to_ptr.vmem [resolvable:$true] %s245
      %248 = dma.vmem_to_hbm [thread:$0]  %s246, 128, %s5, [#allocation3]
    $region25: #{tpu_custom_call.1} parent=1 // pred_fallthru
      _
    // Predicated region
    $region26: #{tpu_custom_call.1} parent=1 // pred_check
      _
    $region27: #{tpu_custom_call.1} parent=1 // pred_check_branch
      %250 = sbr.rel (0) target = $region29
    $region28: #{tpu_custom_call.1} parent=1 // pred_region
      %251 = dma.done [#allocation3], 128
    $region29: #{tpu_custom_call.1} parent=1 // pred_fallthru
      _
    %252 = vsyncpa [#allocation3], 1

</llo_original>
